<compile_context>
chip_gen: v7x
topology: tpu7x:2x2x1
jax: 0.10.0
libtpu: 0.0.40
codegen_flags: <defaults>
</compile_context>

<pallas_src>
import math

import jax
import jax.numpy as jnp
from jax.experimental import pallas as pl
from jax.experimental.pallas import tpu as pltpu

KT = 3  # temporal kernel width of each TimeBlock conv (1, 3), no padding


# ---------------------------------------------------------------------------
# Kernel body: pure 2-D matmul chain, zero reshapes.
# ---------------------------------------------------------------------------
def _make_kernel(T1, T2, Cout, Cs, compute_dtype):
    F1 = T1 * Cout   # width of one conv group after TimeBlock 1
    F2 = T2 * Cout   # width of one conv group after TimeBlock 2

    def kernel(x_ref, a_ref, w1_ref, b1_ref, th_ref, w2_ref, b2_ref, out_ref):
        cdt = compute_dtype
        x = x_ref[...]                                                   # (R, T*Cin)

        # ---- TimeBlock 1: one banded matmul, columns = [conv1 | conv2 | conv3]
        z1 = jnp.dot(x.astype(cdt), w1_ref[...].astype(cdt),
                     preferred_element_type=jnp.float32) + b1_ref[...]   # (R, 3*F1)
        h1 = jax.nn.relu(z1[:, 0 * F1:1 * F1]
                         + jax.nn.sigmoid(z1[:, 1 * F1:2 * F1])
                         + z1[:, 2 * F1:3 * F1])                         # (R, F1)

        # ---- Graph conv: block-diagonal adjacency, one clean (R,R)@(R,F1) matmul
        lfs = jnp.dot(a_ref[0].astype(cdt), h1.astype(cdt),
                      preferred_element_type=jnp.float32)                # (R, F1)

        # ---- Theta1 as block-diagonal matrix + tanh, stays lane-dense
        t2 = jnp.tanh(jnp.dot(lfs.astype(cdt), th_ref[...].astype(cdt),
                              preferred_element_type=jnp.float32))       # (R, T1*Cs)

        # ---- TimeBlock 2: second banded matmul
        z2 = jnp.dot(t2.astype(cdt), w2_ref[...].astype(cdt),
                     preferred_element_type=jnp.float32) + b2_ref[...]   # (R, 3*F2)
        out = jax.nn.relu(z2[:, 0 * F2:1 * F2]
                          + jax.nn.sigmoid(z2[:, 1 * F2:2 * F2])
                          + z2[:, 2 * F2:3 * F2])                        # (R, F2)

        # lane-dense store: one contiguous full-width 2-D slab
        out_ref[...] = out.astype(out_ref.dtype)

    return kernel


# ---------------------------------------------------------------------------
# Host-side weight fusion (banded / block-diagonal), lane-dense layouts
# ---------------------------------------------------------------------------
def _banded_conv_weight(w, T):
    """(KT, Cin, Cout) temporal-conv weight -> block-banded (T*Cin, T1*Cout) weight."""
    Cin, Cout = w.shape[1], w.shape[2]
    T1 = T - (KT - 1)
    Wb = jnp.zeros((T, Cin, T1, Cout), dtype=w.dtype)
    for t_out in range(T1):
        for k in range(KT):
            Wb = Wb.at[t_out + k, :, t_out, :].set(w[k])
    return Wb.reshape(T * Cin, T1 * Cout)


def _fuse_timeblock(w1, w2, w3, b1, b2, b3, T):
    """One TimeBlock -> banded weight (T*Cin, 3*T1*Cout) + bias (1, 3*T1*Cout)."""
    T1 = T - (KT - 1)
    W = jnp.concatenate([_banded_conv_weight(w1, T),
                         _banded_conv_weight(w2, T),
                         _banded_conv_weight(w3, T)], axis=1)
    b = jnp.concatenate([jnp.tile(b1, (1, T1)),
                         jnp.tile(b2, (1, T1)),
                         jnp.tile(b3, (1, T1))], axis=1)
    return W, b


# ---------------------------------------------------------------------------
# Generation-aware tiling
# ---------------------------------------------------------------------------
def _num_tensorcores():
    """Best-effort TensorCore count (v5e/v6e: 1, v7x: 2).  Only affects tiling."""
    try:
        info = pltpu.get_tpu_info()
        for attr in ("num_cores", "core_count", "num_tensor_cores", "tensorcore_count"):
            v = getattr(info, attr, None)
            if isinstance(v, int) and v > 0:
                return v
    except Exception:
        pass
    try:
        if "v7" in jax.devices()[0].device_kind.lower():
            return 2
    except Exception:
        pass
    return 1


def _pick_bt(B, N, T, Cin, Cs, Cout, num_cores=1, vmem_budget_bytes=8 << 20):
    """Largest batch tile fitting a conservative VMEM budget.  Single grid step on
    1-TC chips; >= 2 parallel grid steps on multi-TC chips (v7x)."""
    T1 = T - (KT - 1)
    T2 = T1 - (KT - 1)

    def pad_lane(c):
        return ((int(c) + 127) // 128) * 128

    def pad_sub(r):
        return ((int(r) + 7) // 8) * 8

    # resident weights (counted double-buffered, conservatively), f32 words
    w_words = 2 * (pad_sub(T * Cin) * pad_lane(3 * T1 * Cout)
                   + pad_sub(T1 * Cout) * pad_lane(T1 * Cs)
                   + pad_sub(T1 * Cs) * pad_lane(3 * T2 * Cout)
                   + 8 * pad_lane(3 * T1 * Cout) + 8 * pad_lane(3 * T2 * Cout))

    def est_bytes(bt):
        R = pad_sub(bt * N)
        io = 2 * R * (pad_lane(T * Cin) + pad_lane(bt * N) + pad_lane(T2 * Cout))
        interm = R * (pad_lane(3 * T1 * Cout) + 2 * pad_lane(T1 * Cout)
                      + pad_lane(T1 * Cs) + pad_lane(3 * T2 * Cout))
        return 4 * (io + interm + w_words)

    best = None
    for cand in range(1, B + 1):
        if B % cand:
            continue
        if (cand * N) % 8 and cand != B:
            continue                       # keep row blocks sublane-aligned
        if num_cores > 1 and B > 1 and (B // cand) < 2:
            continue                       # v7x: keep >= 2 parallel grid steps
        if est_bytes(cand) > vmem_budget_bytes:
            continue
        best = cand
    if best is None:                       # fallback: smallest legal tile
        for cand in range(1, B + 1):
            if B % cand == 0 and ((cand * N) % 8 == 0 or cand == B):
                best = cand
                break
        best = best if best is not None else B
    return best


# ---------------------------------------------------------------------------
# Wrapper
# ---------------------------------------------------------------------------
def batch_a_stgcn_block(X, A_hat, params, *, bt=None,
                        compute_dtype=jnp.float32,
                        vmem_limit_bytes=32 * 1024 * 1024):
    """X: (B, N, T, Cin); A_hat: (B, N, N). Returns (B, N, T-4, Cout)."""
    B, N, T, Cin = X.shape
    Cout, Cs = params["theta"].shape
    T1 = T - (KT - 1)
    T2 = T1 - (KT - 1)

    # host-side fused weights (stay VMEM-resident across grid steps)
    W1, Bc1 = _fuse_timeblock(params["w1a"], params["w2a"], params["w3a"],
                              params["b1a"], params["b2a"], params["b3a"], T)
    W2, Bc2 = _fuse_timeblock(params["w1b"], params["w2b"], params["w3b"],
                              params["b1b"], params["b2b"], params["b3b"], T1)
    ThetaB = jnp.kron(jnp.eye(T1, dtype=params["theta"].dtype), params["theta"])
    weight_args = [W1, Bc1, ThetaB, W2, Bc2]

    if bt is None:
        bt = _pick_bt(B, N, T, Cin, Cs, Cout, num_cores=_num_tensorcores())
    assert B % bt == 0, (B, bt)
    G = B // bt
    R = bt * N

    # 2-D lane-dense data layouts
    X2 = X.reshape(B * N, T * Cin)
    A_blk = jnp.einsum('gbij,bc->gbicj',
                       A_hat.reshape(G, bt, N, N),
                       jnp.eye(bt, dtype=A_hat.dtype)).reshape(G, R, R)

    in_specs = [
        pl.BlockSpec((R, T * Cin), lambda g: (g, 0)),      # X row tile
        pl.BlockSpec((1, R, R), lambda g: (g, 0, 0)),      # block-diag adjacency tile
    ] + [pl.BlockSpec(a.shape, lambda g: (0, 0)) for a in weight_args]  # resident weights

    out_spec = pl.BlockSpec((R, T2 * Cout), lambda g: (g, 0))

    kernel = _make_kernel(T1, T2, Cout, Cs, compute_dtype)

    out = pl.pallas_call(
        kernel,
        out_shape=jax.ShapeDtypeStruct((B * N, T2 * Cout), jnp.float32),
        grid=(G,),
        in_specs=in_specs,
        out_specs=out_spec,
        compiler_params=pltpu.CompilerParams(
            dimension_semantics=("parallel",),
            vmem_limit_bytes=vmem_limit_bytes),
    )(X2, A_blk, *weight_args)

    return out.reshape(B, N, T2, Cout)


# ---------------------------------------------------------------------------
# Pure-JAX reference (mirrors the PyTorch forward exactly)
# ---------------------------------------------------------------------------
def reference(X, A_hat, p):
    def conv(x, w, b):
        T_out = x.shape[2] - (KT - 1)
        acc = 0.0
        for k in range(KT):
            acc = acc + jnp.einsum('bnti,io->bnto', x[:, :, k:k + T_out, :], w[k])
        return acc + b[0]

    def time_block(x, w1, w2, w3, b1, b2, b3):
        return jax.nn.relu(conv(x, w1, b1) + jax.nn.sigmoid(conv(x, w2, b2))
                           + conv(x, w3, b3))

    t = time_block(X, p["w1a"], p["w2a"], p["w3a"], p["b1a"], p["b2a"], p["b3a"])
    lfs = jnp.einsum('kij,jklm->kilm', A_hat, jnp.transpose(t, (1, 0, 2, 3)))
    t2 = jnp.tanh(jnp.einsum('ijkl,lp->ijkp', lfs, p["theta"]))
    return time_block(t2, p["w1b"], p["w2b"], p["w3b"], p["b1b"], p["b2b"], p["b3b"])


# ---------------------------------------------------------------------------
# Deterministic parameter init (matches __init__ shapes of BatchA_STGCNBlock)
# ---------------------------------------------------------------------------
def init_params(key, in_channels, spatial_channels, out_channels):
    ks = jax.random.split(key, 13)
    p = {}

    def conv_wb(kw, kb, cin, cout):
        bound = 1.0 / math.sqrt(cin * 1 * KT)  # PyTorch Conv2d default-style bound
        # weight stored as (KT, Cin, Cout) == W_torch[co, ci, 0, k] transposed
        w = jax.random.uniform(kw, (KT, cin, cout), jnp.float32, -bound, bound)
        b = jax.random.uniform(kb, (1, cout), jnp.float32, -bound, bound)
        return w, b

    # temporal1: TimeBlock(in_channels, out_channels) -> conv1/2/3
    p["w1a"], p["b1a"] = conv_wb(ks[0], ks[1], in_channels, out_channels)
    p["w2a"], p["b2a"] = conv_wb(ks[2], ks[3], in_channels, out_channels)
    p["w3a"], p["b3a"] = conv_wb(ks[4], ks[5], in_channels, out_channels)

    # Theta1: (out_channels, spatial_channels), uniform(-1/sqrt(Cs), 1/sqrt(Cs))
    stdv = 1.0 / math.sqrt(spatial_channels)
    p["theta"] = jax.random.uniform(ks[6], (out_channels, spatial_channels),
                                    jnp.float32, -stdv, stdv)

    # temporal2: TimeBlock(spatial_channels, out_channels)
    p["w1b"], p["b1b"] = conv_wb(ks[7], ks[8], spatial_channels, out_channels)
    p["w2b"], p["b2b"] = conv_wb(ks[9], ks[10], spatial_channels, out_channels)
    p["w3b"], p["b3b"] = conv_wb(ks[11], ks[12], spatial_channels, out_channels)
    return p


if __name__ == "__main__":
    # X: (batch, num_nodes, num_timesteps, in_channels); A_hat: (batch, N, N)
    B, N, T = 4, 8, 12
    in_channels, spatial_channels, out_channels = 4, 16, 8

    key = jax.random.PRNGKey(0)
    kx, ka, kp = jax.random.split(key, 3)

    X = jax.random.normal(kx, (B, N, T, in_channels), dtype=jnp.float32)
    A_hat = jax.random.uniform(ka, (B, N, N), dtype=jnp.float32)
    A_hat = A_hat / jnp.sum(A_hat, axis=-1, keepdims=True)  # row-normalized adjacency

    params = init_params(kp, in_channels, spatial_channels, out_channels)

    out = jax.block_until_ready(batch_a_stgcn_block(X, A_hat, params))
    ref = jax.block_until_ready(reference(X, A_hat, params))

    assert out.shape == (B, N, T - 4, out_channels), out.shape
    err = float(jnp.max(jnp.abs(out - ref)))
    assert jnp.allclose(out, ref, atol=1e-4, rtol=1e-4), err

    print("KERNEL_OK")
</pallas_src>

<mosaic_0001>
module attributes {stable_mosaic.version = 11 : i64} {
  func.func @kernel(%arg0: i32, %arg1: memref<32x48xf32, #tpu.memory_space<vmem>>, %arg2: memref<1x32x32xf32, #tpu.memory_space<vmem>>, %arg3: memref<48x240xf32, #tpu.memory_space<vmem>>, %arg4: memref<1x240xf32, #tpu.memory_space<vmem>>, %arg5: memref<80x160xf32, #tpu.memory_space<vmem>>, %arg6: memref<160x192xf32, #tpu.memory_space<vmem>>, %arg7: memref<1x192xf32, #tpu.memory_space<vmem>>, %arg8: memref<32x64xf32, #tpu.memory_space<vmem>>) attributes {dimension_semantics = [#tpu.dimension_semantics<parallel>], iteration_bounds = array<i64: 1>, scalar_prefetch = 0 : i64, scratch_operands = 0 : i64, tpu.core_type = #tpu.core_type<tc>, window_params = [{transform_indices = @transform_0, window_bounds = array<i64: 32, 48>}, {transform_indices = @transform_1, window_bounds = array<i64: 1, 32, 32>}, {pipeline_mode = #tpu.pipeline_mode<synchronous>, transform_indices = @transform_2, window_bounds = array<i64: 48, 240>}, {pipeline_mode = #tpu.pipeline_mode<synchronous>, transform_indices = @transform_3, window_bounds = array<i64: 1, 240>}, {pipeline_mode = #tpu.pipeline_mode<synchronous>, transform_indices = @transform_4, window_bounds = array<i64: 80, 160>}, {pipeline_mode = #tpu.pipeline_mode<synchronous>, transform_indices = @transform_5, window_bounds = array<i64: 160, 192>}, {pipeline_mode = #tpu.pipeline_mode<synchronous>, transform_indices = @transform_6, window_bounds = array<i64: 1, 192>}, {transform_indices = @transform_7, window_bounds = array<i64: 32, 64>}]} {
    %c0 = arith.constant 0 : index
    %c0_0 = arith.constant 0 : index
    %0 = vector.load %arg1[%c0, %c0_0] : memref<32x48xf32, #tpu.memory_space<vmem>>, vector<32x48xf32>
    %c0_1 = arith.constant 0 : index
    %c0_2 = arith.constant 0 : index
    %1 = vector.load %arg3[%c0_1, %c0_2] : memref<48x240xf32, #tpu.memory_space<vmem>>, vector<48x240xf32>
    %cst = arith.constant dense<0.000000e+00> : vector<32x240xf32>
    %2 = tpu.matmul %0, %1, %cst {dimension_numbers = #tpu.dot_dimension_numbers<[1], [0], [0], [1], [0, 0, 1, 1], [], []>} : vector<32x48xf32>, vector<48x240xf32>, vector<32x240xf32> -> vector<32x240xf32>
    %c0_3 = arith.constant 0 : index
    %c0_4 = arith.constant 0 : index
    %3 = vector.load %arg4[%c0_3, %c0_4] : memref<1x240xf32, #tpu.memory_space<vmem>>, vector<1x240xf32>
    %4 = vector.broadcast %3 : vector<1x240xf32> to vector<32x240xf32>
    %5 = arith.addf %2, %4 : vector<32x240xf32>
    %6 = vector.extract_strided_slice %5 {offsets = [0, 0], sizes = [32, 80], strides = [1, 1]} : vector<32x240xf32> to vector<32x80xf32>
    %7 = vector.extract_strided_slice %5 {offsets = [0, 80], sizes = [32, 80], strides = [1, 1]} : vector<32x240xf32> to vector<32x80xf32>
    %8 = arith.negf %7 : vector<32x80xf32>
    %9 = math.exp %8 : vector<32x80xf32>
    %cst_5 = arith.constant 1.000000e+00 : f32
    %10 = vector.broadcast %cst_5 : f32 to vector<32x80xf32>
    %11 = arith.addf %10, %9 : vector<32x80xf32>
    %12 = arith.divf %10, %11 : vector<32x80xf32>
    %13 = arith.addf %6, %12 : vector<32x80xf32>
    %14 = vector.extract_strided_slice %5 {offsets = [0, 160], sizes = [32, 80], strides = [1, 1]} : vector<32x240xf32> to vector<32x80xf32>
    %15 = arith.addf %13, %14 : vector<32x80xf32>
    %cst_6 = arith.constant 0.000000e+00 : f32
    %16 = vector.broadcast %cst_6 : f32 to vector<32x80xf32>
    %17 = arith.maximumf %15, %16 : vector<32x80xf32>
    %c0_7 = arith.constant 0 : index
    %c0_8 = arith.constant 0 : index
    %c0_9 = arith.constant 0 : index
    %18 = vector.load %arg2[%c0_7, %c0_8, %c0_9] : memref<1x32x32xf32, #tpu.memory_space<vmem>>, vector<1x32x32xf32>
    %19 = vector.shape_cast %18 : vector<1x32x32xf32> to vector<32x32xf32>
    %cst_10 = arith.constant dense<0.000000e+00> : vector<32x80xf32>
    %20 = tpu.matmul %19, %17, %cst_10 {dimension_numbers = #tpu.dot_dimension_numbers<[1], [0], [0], [1], [0, 0, 1, 1], [], []>} : vector<32x32xf32>, vector<32x80xf32>, vector<32x80xf32> -> vector<32x80xf32>
    %c0_11 = arith.constant 0 : index
    %c0_12 = arith.constant 0 : index
    %21 = vector.load %arg5[%c0_11, %c0_12] : memref<80x160xf32, #tpu.memory_space<vmem>>, vector<80x160xf32>
    %cst_13 = arith.constant dense<0.000000e+00> : vector<32x160xf32>
    %22 = tpu.matmul %20, %21, %cst_13 {dimension_numbers = #tpu.dot_dimension_numbers<[1], [0], [0], [1], [0, 0, 1, 1], [], []>} : vector<32x80xf32>, vector<80x160xf32>, vector<32x160xf32> -> vector<32x160xf32>
    %23 = math.tanh %22 : vector<32x160xf32>
    %c0_14 = arith.constant 0 : index
    %c0_15 = arith.constant 0 : index
    %24 = vector.load %arg6[%c0_14, %c0_15] : memref<160x192xf32, #tpu.memory_space<vmem>>, vector<160x192xf32>
    %cst_16 = arith.constant dense<0.000000e+00> : vector<32x192xf32>
    %25 = tpu.matmul %23, %24, %cst_16 {dimension_numbers = #tpu.dot_dimension_numbers<[1], [0], [0], [1], [0, 0, 1, 1], [], []>} : vector<32x160xf32>, vector<160x192xf32>, vector<32x192xf32> -> vector<32x192xf32>
    %c0_17 = arith.constant 0 : index
    %c0_18 = arith.constant 0 : index
    %26 = vector.load %arg7[%c0_17, %c0_18] : memref<1x192xf32, #tpu.memory_space<vmem>>, vector<1x192xf32>
    %27 = vector.broadcast %26 : vector<1x192xf32> to vector<32x192xf32>
    %28 = arith.addf %25, %27 : vector<32x192xf32>
    %29 = vector.extract_strided_slice %28 {offsets = [0, 0], sizes = [32, 64], strides = [1, 1]} : vector<32x192xf32> to vector<32x64xf32>
    %30 = vector.extract_strided_slice %28 {offsets = [0, 64], sizes = [32, 64], strides = [1, 1]} : vector<32x192xf32> to vector<32x64xf32>
    %31 = arith.negf %30 : vector<32x64xf32>
    %32 = math.exp %31 : vector<32x64xf32>
    %cst_19 = arith.constant 1.000000e+00 : f32
    %33 = vector.broadcast %cst_19 : f32 to vector<32x64xf32>
    %34 = arith.addf %33, %32 : vector<32x64xf32>
    %35 = arith.divf %33, %34 : vector<32x64xf32>
    %36 = arith.addf %29, %35 : vector<32x64xf32>
    %37 = vector.extract_strided_slice %28 {offsets = [0, 128], sizes = [32, 64], strides = [1, 1]} : vector<32x192xf32> to vector<32x64xf32>
    %38 = arith.addf %36, %37 : vector<32x64xf32>
    %cst_20 = arith.constant 0.000000e+00 : f32
    %39 = vector.broadcast %cst_20 : f32 to vector<32x64xf32>
    %40 = arith.maximumf %38, %39 : vector<32x64xf32>
    %c0_21 = arith.constant 0 : index
    %c0_22 = arith.constant 0 : index
    %41 = vector.load %arg8[%c0_21, %c0_22] : memref<32x64xf32, #tpu.memory_space<vmem>>, vector<32x64xf32>
    tpu.vector_store %arg8[%c0_21, %c0_22], %40 {strides = array<i32>} : memref<32x64xf32, #tpu.memory_space<vmem>>, vector<32x64xf32>,
    return
  }
  func.func @transform_0(%arg0: i32) -> (i32, i32) {
    %c0_i32 = arith.constant 0 : i32
    %c0_i32_0 = arith.constant 0 : i32
    return %arg0, %c0_i32 : i32, i32
  }
  func.func @transform_1(%arg0: i32) -> (i32, i32, i32) {
    %c0_i32 = arith.constant 0 : i32
    %c0_i32_0 = arith.constant 0 : i32
    %c0_i32_1 = arith.constant 0 : i32
    return %arg0, %c0_i32, %c0_i32_0 : i32, i32, i32
  }
  func.func @transform_2(%arg0: i32) -> (i32, i32) {
    %c0_i32 = arith.constant 0 : i32
    %c0_i32_0 = arith.constant 0 : i32
    %c0_i32_1 = arith.constant 0 : i32
    return %c0_i32, %c0_i32_0 : i32, i32
  }
  func.func @transform_3(%arg0: i32) -> (i32, i32) {
    %c0_i32 = arith.constant 0 : i32
    %c0_i32_0 = arith.constant 0 : i32
    %c0_i32_1 = arith.constant 0 : i32
    return %c0_i32, %c0_i32_0 : i32, i32
  }
  func.func @transform_4(%arg0: i32) -> (i32, i32) {
    %c0_i32 = arith.constant 0 : i32
    %c0_i32_0 = arith.constant 0 : i32
    %c0_i32_1 = arith.constant 0 : i32
    return %c0_i32, %c0_i32_0 : i32, i32
  }
  func.func @transform_5(%arg0: i32) -> (i32, i32) {
    %c0_i32 = arith.constant 0 : i32
    %c0_i32_0 = arith.constant 0 : i32
    %c0_i32_1 = arith.constant 0 : i32
    return %c0_i32, %c0_i32_0 : i32, i32
  }
  func.func @transform_6(%arg0: i32) -> (i32, i32) {
    %c0_i32 = arith.constant 0 : i32
    %c0_i32_0 = arith.constant 0 : i32
    %c0_i32_1 = arith.constant 0 : i32
    return %c0_i32, %c0_i32_0 : i32, i32
  }
  func.func @transform_7(%arg0: i32) -> (i32, i32) {
    %c0_i32 = arith.constant 0 : i32
    %c0_i32_0 = arith.constant 0 : i32
    return %arg0, %c0_i32 : i32, i32
  }
}

</mosaic_0001>

<llo_original>
// kernel: tpu_custom_call.1
$region0: #{tpu_custom_call.1}
  #allocation0 [shape = 'u32[]', space=smem, size = 0x4, offset = 0x4, fixed_abs, tag = 'smem constant byte address 0x4 - core index']
  #allocation1 [shape = 'u32[144,128]{1,0:T(1,128)}', space=vmem, size = 0x12000, scoped, tag = 'internal scratch']
  %s0 = inlined_call_operand.hbm [shape: f32[32,48], index: 0, kind: input, shape index: {}]
  %s1 = inlined_call_operand.hbm [shape: f32[1,32,32], index: 1, kind: input, shape index: {}]
  %s2 = inlined_call_operand.hbm [shape: f32[48,240], index: 2, kind: input, shape index: {}]
  %s3 = inlined_call_operand.vmem [shape: f32[1,240], index: 3, kind: input, shape index: {}]
  %s4 = inlined_call_operand.hbm [shape: f32[80,160], index: 4, kind: input, shape index: {}]
  %s5 = inlined_call_operand.hbm [shape: f32[160,192], index: 5, kind: input, shape index: {}]
  %s6 = inlined_call_operand.vmem [shape: f32[1,192], index: 6, kind: input, shape index: {}]
  %s7 = inlined_call_operand.hbm [shape: f32[32,64], index: 7, kind: output, shape index: {}]
  %s8 = sld [smem:[#allocation0]]
  $region58: #{tpu_custom_call.1} parent=0
    _
  %s10 = ssub.s32 1, %s8
  %s11 = scalar_select 0, %s10, %s8
  $region1: #{tpu_custom_call.1} parent=0
    #allocation2 [shape = 'u8[16384]{0}', space=vmem, size = 0x4000, scoped, tag = 'input window, operand 0, single buffered']
    #allocation3 [shape = 's32[1]{0}', space=sflag, size = 0x4, scoped, tag = 'scoped memory for tpu_custom_call.1']
    #allocation4 [shape = 's32[1]{0}', space=sflag, size = 0x4, scoped, tag = 'scoped memory for tpu_custom_call.1']
    #allocation5 [shape = 'u8[16384]{0}', space=vmem, size = 0x4000, scoped, tag = 'input window, operand 1, single buffered']
    #allocation6 [shape = 's32[1]{0}', space=sflag, size = 0x4, scoped, tag = 'scoped memory for tpu_custom_call.1']
    #allocation7 [shape = 'u8[49152]{0}', space=vmem, size = 0xc000, scoped, tag = 'input window, operand 2, single buffered']
    #allocation8 [shape = 'u8[81920]{0}', space=vmem, size = 0x14000, scoped, tag = 'input window, operand 4, single buffered']
    #allocation9 [shape = 's32[1]{0}', space=sflag, size = 0x4, scoped, tag = 'scoped memory for tpu_custom_call.1']
    #allocation10 [shape = 'u8[163840]{0}', space=vmem, size = 0x28000, scoped, tag = 'input window, operand 5, single buffered']
    #allocation11 [shape = 'u8[16384]{0}', space=vmem, size = 0x4000, scoped, tag = 'output window, operand 0, single buffered']
    %12 = vsyncpa [#allocation3], 0
    %13 = vsyncpa [#allocation6], 0
    %14 = vsyncpa [#allocation9], 0
    %15 = vsyncpa [#allocation4], 0
    // Predicated region
    $region2: #{tpu_custom_call.1} parent=1 // pred_check
      _
    $region3: #{tpu_custom_call.1} parent=1 // pred_check_branch
      %17 = sbr.rel (0) target = $region5
    $region4: #{tpu_custom_call.1} parent=1 // pred_region
      %s19 = ssub.s32 512, 512
      %20 = vsyncadd [#allocation3], %s19
      %s21 = sshll.u32 [#allocation2], 4
      %s22 = int_to_ptr.vmem [resolvable:$true] %s21
      %27 = dma.hbm_to_vmem [thread:$0]  %s0, 512, %s22, [#allocation3], 128, 128, 8
    $region5: #{tpu_custom_call.1} parent=1 // pred_fallthru
      _
    // Predicated region
    $region6: #{tpu_custom_call.1} parent=1 // pred_check
      _
    $region7: #{tpu_custom_call.1} parent=1 // pred_check_branch
      %29 = sbr.rel (0) target = $region9
    $region8: #{tpu_custom_call.1} parent=1 // pred_region
      %s31 = ssub.s32 512, 512
      %32 = vsyncadd [#allocation6], %s31
      %s33 = sshll.u32 [#allocation5], 4
      %s34 = int_to_ptr.vmem [resolvable:$true] %s33
      %39 = dma.hbm_to_vmem [thread:$0]  %s1, 512, %s34, [#allocation6], 128, 128, 8
    $region9: #{tpu_custom_call.1} parent=1 // pred_fallthru
      _
    // Predicated region
    $region10: #{tpu_custom_call.1} parent=1 // pred_check
      _
    $region11: #{tpu_custom_call.1} parent=1 // pred_check_branch
      %41 = sbr.rel (0) target = $region13
    $region12: #{tpu_custom_call.1} parent=1 // pred_region
      %s43 = ssub.s32 1536, 1536
      %44 = vsyncadd [#allocation6], %s43
      %s45 = sshll.u32 [#allocation7], 4
      %s46 = int_to_ptr.vmem [resolvable:$true] %s45
      %51 = dma.hbm_to_vmem [thread:$0]  %s2, 1536, %s46, [#allocation6], 256, 256, 16
    $region13: #{tpu_custom_call.1} parent=1 // pred_fallthru
      _
    // Predicated region
    $region14: #{tpu_custom_call.1} parent=1 // pred_check
      _
    $region15: #{tpu_custom_call.1} parent=1 // pred_check_branch
      %53 = sbr.rel (0) target = $region17
    $region16: #{tpu_custom_call.1} parent=1 // pred_region
      _
    $region17: #{tpu_custom_call.1} parent=1 // pred_fallthru
      _
    // Predicated region
    $region18: #{tpu_custom_call.1} parent=1 // pred_check
      _
    $region19: #{tpu_custom_call.1} parent=1 // pred_check_branch
      %55 = sbr.rel (0) target = $region21
    $region20: #{tpu_custom_call.1} parent=1 // pred_region
      %s57 = ssub.s32 2560, 2560
      %58 = vsyncadd [#allocation9], %s57
      %s59 = sshll.u32 [#allocation8], 4
      %s60 = int_to_ptr.vmem [resolvable:$true] %s59
      %65 = dma.hbm_to_vmem [thread:$0]  %s4, 2560, %s60, [#allocation9], 256, 256, 16
    $region21: #{tpu_custom_call.1} parent=1 // pred_fallthru
      _
    // Predicated region
    $region22: #{tpu_custom_call.1} parent=1 // pred_check
      _
    $region23: #{tpu_custom_call.1} parent=1 // pred_check_branch
      %67 = sbr.rel (0) target = $region25
    $region24: #{tpu_custom_call.1} parent=1 // pred_region
      %s69 = ssub.s32 5120, 5120
      %70 = vsyncadd [#allocation9], %s69
      %s71 = sshll.u32 [#allocation10], 4
      %s72 = int_to_ptr.vmem [resolvable:$true] %s71
      %77 = dma.hbm_to_vmem [thread:$0]  %s5, 5120, %s72, [#allocation9], 256, 256, 16
    $region25: #{tpu_custom_call.1} parent=1 // pred_fallthru
      _
    // Predicated region
    $region26: #{tpu_custom_call.1} parent=1 // pred_check
      _
    $region27: #{tpu_custom_call.1} parent=1 // pred_check_branch
      %79 = sbr.rel (0) target = $region29
    $region28: #{tpu_custom_call.1} parent=1 // pred_region
      _
    $region29: #{tpu_custom_call.1} parent=1 // pred_fallthru
      _
    // Predicated region
    $region30: #{tpu_custom_call.1} parent=1 // pred_check
      _
    $region31: #{tpu_custom_call.1} parent=1 // pred_check_branch
      %81 = sbr.rel (0) target = $region33
    $region32: #{tpu_custom_call.1} parent=1 // pred_region
      %82 = dma.done [#allocation3], 512
    $region33: #{tpu_custom_call.1} parent=1 // pred_fallthru
      _
    // Predicated region
    $region34: #{tpu_custom_call.1} parent=1 // pred_check
      _
    $region35: #{tpu_custom_call.1} parent=1 // pred_check_branch
      %84 = sbr.rel (0) target = $region37
    $region36: #{tpu_custom_call.1} parent=1 // pred_region
      %85 = dma.done [#allocation6], 512
    $region37: #{tpu_custom_call.1} parent=1 // pred_fallthru
      _
    // Predicated region
    $region38: #{tpu_custom_call.1} parent=1 // pred_check
      _
    $region39: #{tpu_custom_call.1} parent=1 // pred_check_branch
      %87 = sbr.rel (0) target = $region41
    $region40: #{tpu_custom_call.1} parent=1 // pred_region
      %88 = dma.done [#allocation6], 1536
    $region41: #{tpu_custom_call.1} parent=1 // pred_fallthru
      _
    // Predicated region
    $region42: #{tpu_custom_call.1} parent=1 // pred_check
      _
    $region43: #{tpu_custom_call.1} parent=1 // pred_check_branch
      %90 = sbr.rel (0) target = $region45
    $region44: #{tpu_custom_call.1} parent=1 // pred_region
      %91 = dma.done [#allocation9], 2560
    $region45: #{tpu_custom_call.1} parent=1 // pred_fallthru
      _
    // Predicated region
    $region46: #{tpu_custom_call.1} parent=1 // pred_check
      _
    $region47: #{tpu_custom_call.1} parent=1 // pred_check_branch
      %93 = sbr.rel (0) target = $region49
    $region48: #{tpu_custom_call.1} parent=1 // pred_region
      %94 = dma.done [#allocation9], 5120
    $region49: #{tpu_custom_call.1} parent=1 // pred_fallthru
      _
    %v95 = vld [vmem:[#allocation2] sm:$0xff]
    %v96 = vld [vmem:[#allocation2 + $0x8] sm:$0xff]
    %v97 = vld [vmem:[#allocation2 + $0x10] sm:$0xff]
    %v98 = vld [vmem:[#allocation2 + $0x18] sm:$0xff]
    %v99 = vld [vmem:[#allocation7] sm:$0xff]
    %v100 = vld [vmem:[#allocation7 + $0x8] sm:$0xff]
    %v101 = vld [vmem:[#allocation7 + $0x10] sm:$0xff]
    %v102 = vld [vmem:[#allocation7 + $0x18] sm:$0xff]
    %v103 = vld [vmem:[#allocation7 + $0x20] sm:$0xff]
    %v104 = vld [vmem:[#allocation7 + $0x28] sm:$0xff]
    %v105 = vld [vmem:[#allocation7 + $0x30] sm:$0xff]
    %v106 = vld [vmem:[#allocation7 + $0x38] sm:$0xff]
    %v107 = vld [vmem:[#allocation7 + $0x40] sm:$0xff]
    %v108 = vld [vmem:[#allocation7 + $0x48] sm:$0xff]
    %v109 = vld [vmem:[#allocation7 + $0x50] sm:$0xff]
    %v110 = vld [vmem:[#allocation7 + $0x58] sm:$0xff]
    %v111 = vld [vmem:[%s3] sm:$0x3]
    %v113 = vlaneseq
    %v114 = vshrl.u32 %v113, 7
    %v115 = vsub.s32 0, %v114
    %v116 = vrot.slane %v111, %v115
    %v117 = vlaneseq
    %v118 = vshrl.u32 %v117, 7
    %v119 = vsub.s32 1, %v118
    %v120 = vrot.slane %v111, %v119
    %vm123 = vcmask 392192
    %v125 = vsel %vm123, %v95, 0
    %v128 = vsel %vm123, %v96, 0
    %v131 = vsel %vm123, %v97, 0
    %v134 = vsel %vm123, %v98, 0
    %136 = vmatprep.subr.mxu0 %v100
    %137 = vmatpush1.msra.mxu0 %v99
    %138 = vmatprep.subr.mxu0 %v102
    %139 = vmatpush1.msra.mxu0 %v101
    %140 = vmatprep.subr.mxu0 %v104
    %141 = vmatpush1.msra.mxu0 %v103
    %142 = vmatprep.subr.mxu0 %v106
    %143 = vmatpush1.msra.mxu0 %v105
    %144 = vmatprep.subr.mxu0 %v108
    %145 = vmatpush1.msra.mxu0 %v107
    %146 = vmatprep.subr.mxu0 %v110
    %147 = vmatpush1.msra.mxu0 %v109
    %148 = vmatprep.subr.mxu0 0.0
    %149 = vmatpush1.msra.mxu0 0.0
    %150 = vmatprep.subr.mxu0 0.0
    %151 = vmatpush1.msra.mxu0 0.0
    %152 = vmatprep.subr.mxu0 0.0
    %153 = vmatpush1.msra.mxu0 0.0
    %154 = vmatprep.subr.mxu0 0.0
    %155 = vmatpush1.msra.mxu0 0.0
    %156 = vmatprep.subr.mxu0 0.0
    %157 = vmatpush1.msra.mxu0 0.0
    %158 = vmatprep.subr.mxu0 0.0
    %159 = vmatpush1.msra.mxu0 0.0
    %160 = vmatprep.subr.mxu0 0.0
    %161 = vmatpush1.msra.mxu0 0.0
    %162 = vmatprep.subr.mxu0 0.0
    %163 = vmatpush1.msra.mxu0 0.0
    %164 = vmatprep.subr.mxu0 0.0
    %165 = vmatpush1.msra.mxu0 0.0
    %166 = vmatprep.subr.mxu0 0.0
    %167 = vmatpush1.msra.mxu0 0.0
    %168 = vmatprep.subr.mxu0 0.0
    %169 = vmatpush1.msra.mxu0 0.0
    %170 = vmatprep.subr.mxu0 0.0
    %171 = vmatpush1.msra.mxu0 0.0
    %172 = vmatprep.subr.mxu0 0.0
    %173 = vmatpush1.msra.mxu0 0.0
    %174 = vmatprep.subr.mxu0 0.0
    %175 = vmatpush1.msra.mxu0 0.0
    %176 = vmatprep.subr.mxu0 0.0
    %177 = vmatpush1.msra.mxu0 0.0
    %178 = vmatprep.subr.mxu0 0.0
    %179 = vmatpush1.msra.mxu0 0.0
    %180 = vmatprep.subr.mxu0 0.0
    %181 = vmatpush1.msra.mxu0 0.0
    %182 = vmatprep.subr.mxu0 0.0
    %183 = vmatpush1.msra.mxu0 0.0
    %184 = vmatprep.subr.mxu0 0.0
    %185 = vmatpush1.msra.mxu0 0.0
    %186 = vmatprep.subr.mxu0 0.0
    %187 = vmatpush1.msra.mxu0 0.0
    %188 = vmatprep.subr.mxu0 0.0
    %189 = vmatpush1.msra.mxu0 0.0
    %190 = vmatprep.subr.mxu0 0.0
    %191 = vmatpush1.msra.mxu0 0.0
    %192 = vmatprep.subr.mxu0 0.0
    %193 = vmatpush1.msra.mxu0 0.0
    %194 = vmatprep.subr.mxu0 0.0
    %195 = vmatpush1.msra.mxu0 0.0
    %196 = vmatprep.subr.mxu0 0.0
    %197 = vmatpush1.msra.mxu0 0.0
    %198 = vmatprep.subr.mxu0 0.0
    %199 = vmatpush1.msra.mxu0 0.0
    %200 = vmatprep.mubr.f32.mxu0 0.0
    %201 = vmatmul.mubr.f32.gmra.mrb[0].mxu0 %v125
    %v202 = vpop.f32.mrb[0].mxu0
    %v203 = vadd.f32 %v116, %v202
    %v204 = vpop.f32.mrb[0].mxu0
    %v205 = vadd.f32 %v120, %v204
    %206 = vmatprep.mubr.f32.mxu0 0.0
    %207 = vmatmul.mubr.f32.gmra.mrb[0].mxu0 %v128
    %v208 = vpop.f32.mrb[0].mxu0
    %v209 = vadd.f32 %v116, %v208
    %v210 = vpop.f32.mrb[0].mxu0
    %v211 = vadd.f32 %v120, %v210
    %212 = vmatprep.mubr.f32.mxu0 0.0
    %213 = vmatmul.mubr.f32.gmra.mrb[0].mxu0 %v131
    %v214 = vpop.f32.mrb[0].mxu0
    %v215 = vadd.f32 %v116, %v214
    %v216 = vpop.f32.mrb[0].mxu0
    %v217 = vadd.f32 %v120, %v216
    %218 = vmatprep.mubr.f32.mxu0 0.0
    %219 = vmatmul.mubr.f32.gmra.mrb[0].mxu0 %v134
    %v220 = vpop.f32.mrb[0].mxu0
    %v221 = vadd.f32 %v116, %v220
    %v222 = vpop.f32.mrb[0].mxu0
    %v223 = vadd.f32 %v120, %v222
    %224 = vdwg.mxu0
    %v225 = vxor.u32 %v203, 2147483648
    %v226 = vxor.u32 %v205, 2147483648
    %v227 = vxor.u32 %v209, 2147483648
    %v228 = vxor.u32 %v211, 2147483648
    %v229 = vxor.u32 %v215, 2147483648
    %v230 = vxor.u32 %v217, 2147483648
    %v231 = vxor.u32 %v221, 2147483648
    %v232 = vxor.u32 %v223, 2147483648
    %v233 = vmul.f32 %v225, 1.442695
    %v234 = vpow.pop %v233
    %v235 = vmul.f32 %v226, 1.442695
    %v236 = vpow.pop %v235
    %v237 = vmul.f32 %v227, 1.442695
    %v238 = vpow.pop %v237
    %v239 = vmul.f32 %v228, 1.442695
    %v240 = vpow.pop %v239
    %v241 = vmul.f32 %v229, 1.442695
    %v242 = vpow.pop %v241
    %v243 = vmul.f32 %v230, 1.442695
    %v244 = vpow.pop %v243
    %v245 = vmul.f32 %v231, 1.442695
    %v246 = vpow.pop %v245
    %v247 = vmul.f32 %v232, 1.442695
    %v248 = vpow.pop %v247
    %v249 = vadd.f32 %v234, 1.0
    %v250 = vadd.f32 %v236, 1.0
    %v251 = vadd.f32 %v238, 1.0
    %v252 = vadd.f32 %v240, 1.0
    %v253 = vadd.f32 %v242, 1.0
    %v254 = vadd.f32 %v244, 1.0
    %v255 = vadd.f32 %v246, 1.0
    %v256 = vadd.f32 %v248, 1.0
    %v257 = vrcp.pop %v249
    %v258 = vmul.f32 1.0, %v257
    %v259 = vrcp.pop %v250
    %v260 = vmul.f32 1.0, %v259
    %v261 = vrcp.pop %v251
    %v262 = vmul.f32 1.0, %v261
    %v263 = vrcp.pop %v252
    %v264 = vmul.f32 1.0, %v263
    %v265 = vrcp.pop %v253
    %v266 = vmul.f32 1.0, %v265
    %v267 = vrcp.pop %v254
    %v268 = vmul.f32 1.0, %v267
    %v269 = vrcp.pop %v255
    %v270 = vmul.f32 1.0, %v269
    %v271 = vrcp.pop %v256
    %v272 = vmul.f32 1.0, %v271
    %281 = vrot.lane.b32.xlu0 %v258, 48
    %v282 = vpop.permute.xlu0 %281
    %283 = vrot.lane.b32.xlu0 %v260, 48
    %v284 = vpop.permute.xlu0 %283
    %285 = vrot.lane.b32.xlu0 %v262, 48
    %v286 = vpop.permute.xlu0 %285
    %287 = vrot.lane.b32.xlu0 %v264, 48
    %v288 = vpop.permute.xlu0 %287
    %289 = vrot.lane.b32.xlu0 %v266, 48
    %v290 = vpop.permute.xlu0 %289
    %291 = vrot.lane.b32.xlu0 %v268, 48
    %v292 = vpop.permute.xlu0 %291
    %293 = vrot.lane.b32.xlu0 %v270, 48
    %v294 = vpop.permute.xlu0 %293
    %295 = vrot.lane.b32.xlu0 %v272, 48
    %v296 = vpop.permute.xlu0 %295
    %v297 = vsel %vm123, %v282, %v284
    %v298 = vsel %vm123, %v286, %v288
    %v299 = vsel %vm123, %v290, %v292
    %v300 = vsel %vm123, %v294, %v296
    %v305 = vadd.f32 %v203, %v297
    %v306 = vadd.f32 %v209, %v298
    %v307 = vadd.f32 %v215, %v299
    %v308 = vadd.f32 %v221, %v300
    %313 = vrot.lane.b32.xlu0 %v205, 96
    %v314 = vpop.permute.xlu0 %313
    %315 = vrot.lane.b32.xlu0 %v211, 96
    %v316 = vpop.permute.xlu0 %315
    %317 = vrot.lane.b32.xlu0 %v217, 96
    %v318 = vpop.permute.xlu0 %317
    %319 = vrot.lane.b32.xlu0 %v223, 96
    %v320 = vpop.permute.xlu0 %319
    %v325 = vadd.f32 %v305, %v314
    %v326 = vadd.f32 %v306, %v316
    %v327 = vadd.f32 %v307, %v318
    %v328 = vadd.f32 %v308, %v320
    %v329 = vmax.f32 %v325, 0.0
    %v330 = vmax.f32 %v326, 0.0
    %v331 = vmax.f32 %v327, 0.0
    %v332 = vmax.f32 %v328, 0.0
    %v333 = vld [vmem:[#allocation5] sm:$0xff]
    %v334 = vld [vmem:[#allocation5 + $0x8] sm:$0xff]
    %v335 = vld [vmem:[#allocation5 + $0x10] sm:$0xff]
    %v336 = vld [vmem:[#allocation5 + $0x18] sm:$0xff]
    %vm337 = vcmask 261120
    %v339 = vsel %vm337, %v333, 0
    %v342 = vsel %vm337, %v334, 0
    %v345 = vsel %vm337, %v335, 0
    %v348 = vsel %vm337, %v336, 0
    %350 = vmatprep.subr.mxu0 0.0
    %351 = vmatpush1.msra.mxu0 %v329
    %352 = vmatprep.subr.mxu0 0.0
    %353 = vmatpush1.msra.mxu0 %v330
    %354 = vmatprep.subr.mxu0 0.0
    %355 = vmatpush1.msra.mxu0 %v331
    %356 = vmatprep.subr.mxu0 0.0
    %357 = vmatpush1.msra.mxu0 %v332
    %358 = vmatprep.subr.mxu0 0.0
    %359 = vmatpush1.msra.mxu0 0.0
    %360 = vmatprep.subr.mxu0 0.0
    %361 = vmatpush1.msra.mxu0 0.0
    %362 = vmatprep.subr.mxu0 0.0
    %363 = vmatpush1.msra.mxu0 0.0
    %364 = vmatprep.subr.mxu0 0.0
    %365 = vmatpush1.msra.mxu0 0.0
    %366 = vmatprep.subr.mxu0 0.0
    %367 = vmatpush1.msra.mxu0 0.0
    %368 = vmatprep.subr.mxu0 0.0
    %369 = vmatpush1.msra.mxu0 0.0
    %370 = vmatprep.subr.mxu0 0.0
    %371 = vmatpush1.msra.mxu0 0.0
    %372 = vmatprep.subr.mxu0 0.0
    %373 = vmatpush1.msra.mxu0 0.0
    %374 = vmatprep.subr.mxu0 0.0
    %375 = vmatpush1.msra.mxu0 0.0
    %376 = vmatprep.subr.mxu0 0.0
    %377 = vmatpush1.msra.mxu0 0.0
    %378 = vmatprep.subr.mxu0 0.0
    %379 = vmatpush1.msra.mxu0 0.0
    %380 = vmatprep.subr.mxu0 0.0
    %381 = vmatpush1.msra.mxu0 0.0
    %382 = vmatprep.subr.mxu0 0.0
    %383 = vmatpush1.msra.mxu0 0.0
    %384 = vmatprep.subr.mxu0 0.0
    %385 = vmatpush1.msra.mxu0 0.0
    %386 = vmatprep.subr.mxu0 0.0
    %387 = vmatpush1.msra.mxu0 0.0
    %388 = vmatprep.subr.mxu0 0.0
    %389 = vmatpush1.msra.mxu0 0.0
    %390 = vmatprep.subr.mxu0 0.0
    %391 = vmatpush1.msra.mxu0 0.0
    %392 = vmatprep.subr.mxu0 0.0
    %393 = vmatpush1.msra.mxu0 0.0
    %394 = vmatprep.subr.mxu0 0.0
    %395 = vmatpush1.msra.mxu0 0.0
    %396 = vmatprep.subr.mxu0 0.0
    %397 = vmatpush1.msra.mxu0 0.0
    %398 = vmatprep.subr.mxu0 0.0
    %399 = vmatpush1.msra.mxu0 0.0
    %400 = vmatprep.subr.mxu0 0.0
    %401 = vmatpush1.msra.mxu0 0.0
    %402 = vmatprep.subr.mxu0 0.0
    %403 = vmatpush1.msra.mxu0 0.0
    %404 = vmatprep.subr.mxu0 0.0
    %405 = vmatpush1.msra.mxu0 0.0
    %406 = vmatprep.subr.mxu0 0.0
    %407 = vmatpush1.msra.mxu0 0.0
    %408 = vmatprep.subr.mxu0 0.0
    %409 = vmatpush1.msra.mxu0 0.0
    %410 = vmatprep.subr.mxu0 0.0
    %411 = vmatpush1.msra.mxu0 0.0
    %412 = vmatprep.subr.mxu0 0.0
    %413 = vmatpush1.msra.mxu0 0.0
    %414 = vmatprep.mubr.f32.mxu0 0.0
    %415 = vmatmul.mubr.f32.gmra.mrb[0].mxu0 %v339
    %v416 = vpop.f32.mrb[0].mxu0
    %v417 = vadd.f32 0.0, %v416
    %v418 = vpop.f32.mrb[0].mxu0
    %419 = vmatprep.mubr.f32.mxu0 0.0
    %420 = vmatmul.mubr.f32.gmra.mrb[0].mxu0 %v342
    %v421 = vpop.f32.mrb[0].mxu0
    %v422 = vadd.f32 0.0, %v421
    %v423 = vpop.f32.mrb[0].mxu0
    %424 = vmatprep.mubr.f32.mxu0 0.0
    %425 = vmatmul.mubr.f32.gmra.mrb[0].mxu0 %v345
    %v426 = vpop.f32.mrb[0].mxu0
    %v427 = vadd.f32 0.0, %v426
    %v428 = vpop.f32.mrb[0].mxu0
    %429 = vmatprep.mubr.f32.mxu0 0.0
    %430 = vmatmul.mubr.f32.gmra.mrb[0].mxu0 %v348
    %v431 = vpop.f32.mrb[0].mxu0
    %v432 = vadd.f32 0.0, %v431
    %v433 = vpop.f32.mrb[0].mxu0
    %434 = vdwg.mxu0
    %v435 = vld [vmem:[#allocation8] sm:$0xff]
    %v436 = vld [vmem:[#allocation8 + $0x8] sm:$0xff]
    %v437 = vld [vmem:[#allocation8 + $0x10] sm:$0xff]
    %v438 = vld [vmem:[#allocation8 + $0x18] sm:$0xff]
    %v439 = vld [vmem:[#allocation8 + $0x20] sm:$0xff]
    %v440 = vld [vmem:[#allocation8 + $0x28] sm:$0xff]
    %v441 = vld [vmem:[#allocation8 + $0x30] sm:$0xff]
    %v442 = vld [vmem:[#allocation8 + $0x38] sm:$0xff]
    %v443 = vld [vmem:[#allocation8 + $0x40] sm:$0xff]
    %v444 = vld [vmem:[#allocation8 + $0x48] sm:$0xff]
    %v445 = vld [vmem:[#allocation8 + $0x50] sm:$0xff]
    %v446 = vld [vmem:[#allocation8 + $0x58] sm:$0xff]
    %v447 = vld [vmem:[#allocation8 + $0x60] sm:$0xff]
    %v448 = vld [vmem:[#allocation8 + $0x68] sm:$0xff]
    %v449 = vld [vmem:[#allocation8 + $0x70] sm:$0xff]
    %v450 = vld [vmem:[#allocation8 + $0x78] sm:$0xff]
    %v451 = vld [vmem:[#allocation8 + $0x80] sm:$0xff]
    %v452 = vld [vmem:[#allocation8 + $0x88] sm:$0xff]
    %v453 = vld [vmem:[#allocation8 + $0x90] sm:$0xff]
    %v454 = vld [vmem:[#allocation8 + $0x98] sm:$0xff]
    %vm455 = vcmask 654336
    %v457 = vsel %vm455, %v417, 0
    %v460 = vsel %vm455, %v422, 0
    %v463 = vsel %vm455, %v427, 0
    %v466 = vsel %vm455, %v432, 0
    %468 = vmatprep.subr.mxu0 %v436
    %469 = vmatpush1.msra.mxu0 %v435
    %470 = vmatprep.subr.mxu0 %v438
    %471 = vmatpush1.msra.mxu0 %v437
    %472 = vmatprep.subr.mxu0 %v440
    %473 = vmatpush1.msra.mxu0 %v439
    %474 = vmatprep.subr.mxu0 %v442
    %475 = vmatpush1.msra.mxu0 %v441
    %476 = vmatprep.subr.mxu0 %v444
    %477 = vmatpush1.msra.mxu0 %v443
    %478 = vmatprep.subr.mxu0 %v446
    %479 = vmatpush1.msra.mxu0 %v445
    %480 = vmatprep.subr.mxu0 %v448
    %481 = vmatpush1.msra.mxu0 %v447
    %482 = vmatprep.subr.mxu0 %v450
    %483 = vmatpush1.msra.mxu0 %v449
    %484 = vmatprep.subr.mxu0 %v452
    %485 = vmatpush1.msra.mxu0 %v451
    %486 = vmatprep.subr.mxu0 %v454
    %487 = vmatpush1.msra.mxu0 %v453
    %488 = vmatprep.subr.mxu0 0.0
    %489 = vmatpush1.msra.mxu0 0.0
    %490 = vmatprep.subr.mxu0 0.0
    %491 = vmatpush1.msra.mxu0 0.0
    %492 = vmatprep.subr.mxu0 0.0
    %493 = vmatpush1.msra.mxu0 0.0
    %494 = vmatprep.subr.mxu0 0.0
    %495 = vmatpush1.msra.mxu0 0.0
    %496 = vmatprep.subr.mxu0 0.0
    %497 = vmatpush1.msra.mxu0 0.0
    %498 = vmatprep.subr.mxu0 0.0
    %499 = vmatpush1.msra.mxu0 0.0
    %500 = vmatprep.subr.mxu0 0.0
    %501 = vmatpush1.msra.mxu0 0.0
    %502 = vmatprep.subr.mxu0 0.0
    %503 = vmatpush1.msra.mxu0 0.0
    %504 = vmatprep.subr.mxu0 0.0
    %505 = vmatpush1.msra.mxu0 0.0
    %506 = vmatprep.subr.mxu0 0.0
    %507 = vmatpush1.msra.mxu0 0.0
    %508 = vmatprep.subr.mxu0 0.0
    %509 = vmatpush1.msra.mxu0 0.0
    %510 = vmatprep.subr.mxu0 0.0
    %511 = vmatpush1.msra.mxu0 0.0
    %512 = vmatprep.subr.mxu0 0.0
    %513 = vmatpush1.msra.mxu0 0.0
    %514 = vmatprep.subr.mxu0 0.0
    %515 = vmatpush1.msra.mxu0 0.0
    %516 = vmatprep.subr.mxu0 0.0
    %517 = vmatpush1.msra.mxu0 0.0
    %518 = vmatprep.subr.mxu0 0.0
    %519 = vmatpush1.msra.mxu0 0.0
    %520 = vmatprep.subr.mxu0 0.0
    %521 = vmatpush1.msra.mxu0 0.0
    %522 = vmatprep.subr.mxu0 0.0
    %523 = vmatpush1.msra.mxu0 0.0
    %524 = vmatprep.subr.mxu0 0.0
    %525 = vmatpush1.msra.mxu0 0.0
    %526 = vmatprep.subr.mxu0 0.0
    %527 = vmatpush1.msra.mxu0 0.0
    %528 = vmatprep.subr.mxu0 0.0
    %529 = vmatpush1.msra.mxu0 0.0
    %530 = vmatprep.subr.mxu0 0.0
    %531 = vmatpush1.msra.mxu0 0.0
    %532 = vmatprep.mubr.f32.mxu0 0.0
    %533 = vmatmul.mubr.f32.gmra.mrb[0].mxu0 %v457
    %v534 = vpop.f32.mrb[0].mxu0
    %v535 = vadd.f32 0.0, %v534
    %v536 = vpop.f32.mrb[0].mxu0
    %v537 = vadd.f32 0.0, %v536
    %538 = vmatprep.mubr.f32.mxu0 0.0
    %539 = vmatmul.mubr.f32.gmra.mrb[0].mxu0 %v460
    %v540 = vpop.f32.mrb[0].mxu0
    %v541 = vadd.f32 0.0, %v540
    %v542 = vpop.f32.mrb[0].mxu0
    %v543 = vadd.f32 0.0, %v542
    %544 = vmatprep.mubr.f32.mxu0 0.0
    %545 = vmatmul.mubr.f32.gmra.mrb[0].mxu0 %v463
    %v546 = vpop.f32.mrb[0].mxu0
    %v547 = vadd.f32 0.0, %v546
    %v548 = vpop.f32.mrb[0].mxu0
    %v549 = vadd.f32 0.0, %v548
    %550 = vmatprep.mubr.f32.mxu0 0.0
    %551 = vmatmul.mubr.f32.gmra.mrb[0].mxu0 %v466
    %v552 = vpop.f32.mrb[0].mxu0
    %v553 = vadd.f32 0.0, %v552
    %v554 = vpop.f32.mrb[0].mxu0
    %v555 = vadd.f32 0.0, %v554
    %556 = vdwg.mxu0
    %v557 = vtanh.pop %v535
    %v558 = vtanh.pop %v537
    %v559 = vtanh.pop %v541
    %v560 = vtanh.pop %v543
    %v561 = vtanh.pop %v547
    %v562 = vtanh.pop %v549
    %v563 = vtanh.pop %v553
    %v564 = vtanh.pop %v555
    %v565 = vld [vmem:[#allocation10] sm:$0xff]
    %v566 = vld [vmem:[#allocation10 + $0x8] sm:$0xff]
    %v567 = vld [vmem:[#allocation10 + $0x10] sm:$0xff]
    %v568 = vld [vmem:[#allocation10 + $0x18] sm:$0xff]
    %v569 = vld [vmem:[#allocation10 + $0x20] sm:$0xff]
    %v570 = vld [vmem:[#allocation10 + $0x28] sm:$0xff]
    %v571 = vld [vmem:[#allocation10 + $0x30] sm:$0xff]
    %v572 = vld [vmem:[#allocation10 + $0x38] sm:$0xff]
    %v573 = vld [vmem:[#allocation10 + $0x40] sm:$0xff]
    %v574 = vld [vmem:[#allocation10 + $0x48] sm:$0xff]
    %v575 = vld [vmem:[#allocation10 + $0x50] sm:$0xff]
    %v576 = vld [vmem:[#allocation10 + $0x58] sm:$0xff]
    %v577 = vld [vmem:[#allocation10 + $0x60] sm:$0xff]
    %v578 = vld [vmem:[#allocation10 + $0x68] sm:$0xff]
    %v579 = vld [vmem:[#allocation10 + $0x70] sm:$0xff]
    %v580 = vld [vmem:[#allocation10 + $0x78] sm:$0xff]
    %v581 = vld [vmem:[#allocation10 + $0x80] sm:$0xff]
    %v582 = vld [vmem:[#allocation10 + $0x88] sm:$0xff]
    %v583 = vld [vmem:[#allocation10 + $0x90] sm:$0xff]
    %v584 = vld [vmem:[#allocation10 + $0x98] sm:$0xff]
    %v585 = vld [vmem:[#allocation10 + $0xa0] sm:$0xff]
    %v586 = vld [vmem:[#allocation10 + $0xa8] sm:$0xff]
    %v587 = vld [vmem:[#allocation10 + $0xb0] sm:$0xff]
    %v588 = vld [vmem:[#allocation10 + $0xb8] sm:$0xff]
    %v589 = vld [vmem:[#allocation10 + $0xc0] sm:$0xff]
    %v590 = vld [vmem:[#allocation10 + $0xc8] sm:$0xff]
    %v591 = vld [vmem:[#allocation10 + $0xd0] sm:$0xff]
    %v592 = vld [vmem:[#allocation10 + $0xd8] sm:$0xff]
    %v593 = vld [vmem:[#allocation10 + $0xe0] sm:$0xff]
    %v594 = vld [vmem:[#allocation10 + $0xe8] sm:$0xff]
    %v595 = vld [vmem:[#allocation10 + $0xf0] sm:$0xff]
    %v596 = vld [vmem:[#allocation10 + $0xf8] sm:$0xff]
    %v597 = vld [vmem:[#allocation10 + $0x100] sm:$0xff]
    %v598 = vld [vmem:[#allocation10 + $0x108] sm:$0xff]
    %v599 = vld [vmem:[#allocation10 + $0x110] sm:$0xff]
    %v600 = vld [vmem:[#allocation10 + $0x118] sm:$0xff]
    %v601 = vld [vmem:[#allocation10 + $0x120] sm:$0xff]
    %v602 = vld [vmem:[#allocation10 + $0x128] sm:$0xff]
    %v603 = vld [vmem:[#allocation10 + $0x130] sm:$0xff]
    %v604 = vld [vmem:[#allocation10 + $0x138] sm:$0xff]
    %v605 = vld [vmem:[%s6] sm:$0x3]
    %v607 = vlaneseq
    %v608 = vshrl.u32 %v607, 7
    %v609 = vsub.s32 0, %v608
    %v610 = vrot.slane %v605, %v609
    %v611 = vlaneseq
    %v612 = vshrl.u32 %v611, 7
    %v613 = vsub.s32 1, %v612
    %v614 = vrot.slane %v605, %v613
    %v618 = vsel %vm337, %v558, 0
    %v621 = vsel %vm337, %v560, 0
    %v624 = vsel %vm337, %v562, 0
    %v627 = vsel %vm337, %v564, 0
    %629 = vmatprep.subr.mxu0 %v566
    %630 = vmatpush1.msra.mxu0 %v565
    %631 = vmatprep.subr.mxu0 %v568
    %632 = vmatpush1.msra.mxu0 %v567
    %633 = vmatprep.subr.mxu0 %v570
    %634 = vmatpush1.msra.mxu0 %v569
    %635 = vmatprep.subr.mxu0 %v572
    %636 = vmatpush1.msra.mxu0 %v571
    %637 = vmatprep.subr.mxu0 %v574
    %638 = vmatpush1.msra.mxu0 %v573
    %639 = vmatprep.subr.mxu0 %v576
    %640 = vmatpush1.msra.mxu0 %v575
    %641 = vmatprep.subr.mxu0 %v578
    %642 = vmatpush1.msra.mxu0 %v577
    %643 = vmatprep.subr.mxu0 %v580
    %644 = vmatpush1.msra.mxu0 %v579
    %645 = vmatprep.subr.mxu0 %v582
    %646 = vmatpush1.msra.mxu0 %v581
    %647 = vmatprep.subr.mxu0 %v584
    %648 = vmatpush1.msra.mxu0 %v583
    %649 = vmatprep.subr.mxu0 %v586
    %650 = vmatpush1.msra.mxu0 %v585
    %651 = vmatprep.subr.mxu0 %v588
    %652 = vmatpush1.msra.mxu0 %v587
    %653 = vmatprep.subr.mxu0 %v590
    %654 = vmatpush1.msra.mxu0 %v589
    %655 = vmatprep.subr.mxu0 %v592
    %656 = vmatpush1.msra.mxu0 %v591
    %657 = vmatprep.subr.mxu0 %v594
    %658 = vmatpush1.msra.mxu0 %v593
    %659 = vmatprep.subr.mxu0 %v596
    %660 = vmatpush1.msra.mxu0 %v595
    %661 = vmatprep.subr.mxu0 %v598
    %662 = vmatpush1.msra.mxu0 %v597
    %663 = vmatprep.subr.mxu0 %v600
    %664 = vmatpush1.msra.mxu0 %v599
    %665 = vmatprep.subr.mxu0 %v602
    %666 = vmatpush1.msra.mxu0 %v601
    %667 = vmatprep.subr.mxu0 %v604
    %668 = vmatpush1.msra.mxu0 %v603
    %669 = vmatprep.subr.mxu0 0.0
    %670 = vmatpush1.msra.mxu0 0.0
    %671 = vmatprep.subr.mxu0 0.0
    %672 = vmatpush1.msra.mxu0 0.0
    %673 = vmatprep.subr.mxu0 0.0
    %674 = vmatpush1.msra.mxu0 0.0
    %675 = vmatprep.subr.mxu0 0.0
    %676 = vmatpush1.msra.mxu0 0.0
    %677 = vmatprep.subr.mxu0 0.0
    %678 = vmatpush1.msra.mxu0 0.0
    %679 = vmatprep.subr.mxu0 0.0
    %680 = vmatpush1.msra.mxu0 0.0
    %681 = vmatprep.subr.mxu0 0.0
    %682 = vmatpush1.msra.mxu0 0.0
    %683 = vmatprep.subr.mxu0 0.0
    %684 = vmatpush1.msra.mxu0 0.0
    %685 = vmatprep.subr.mxu0 0.0
    %686 = vmatpush1.msra.mxu0 0.0
    %687 = vmatprep.subr.mxu0 0.0
    %688 = vmatpush1.msra.mxu0 0.0
    %689 = vmatprep.subr.mxu0 0.0
    %690 = vmatpush1.msra.mxu0 0.0
    %691 = vmatprep.subr.mxu0 0.0
    %692 = vmatpush1.msra.mxu0 0.0
    %693 = vmatprep.mubr.f32.mxu0 %v618
    %694 = vmatmul.mubr.f32.gmra.mrb[0].mxu0 %v557
    %v695 = vpop.f32.mrb[0].mxu0
    %v696 = vadd.f32 %v610, %v695
    %v697 = vpop.f32.mrb[0].mxu0
    %v698 = vadd.f32 %v614, %v697
    %699 = vmatprep.mubr.f32.mxu0 %v621
    %700 = vmatmul.mubr.f32.gmra.mrb[0].mxu0 %v559
    %v701 = vpop.f32.mrb[0].mxu0
    %v702 = vadd.f32 %v610, %v701
    %v703 = vpop.f32.mrb[0].mxu0
    %v704 = vadd.f32 %v614, %v703
    %705 = vmatprep.mubr.f32.mxu0 %v624
    %706 = vmatmul.mubr.f32.gmra.mrb[0].mxu0 %v561
    %v707 = vpop.f32.mrb[0].mxu0
    %v708 = vadd.f32 %v610, %v707
    %v709 = vpop.f32.mrb[0].mxu0
    %v710 = vadd.f32 %v614, %v709
    %711 = vmatprep.mubr.f32.mxu0 %v627
    %712 = vmatmul.mubr.f32.gmra.mrb[0].mxu0 %v563
    %v713 = vpop.f32.mrb[0].mxu0
    %v714 = vadd.f32 %v610, %v713
    %v715 = vpop.f32.mrb[0].mxu0
    %v716 = vadd.f32 %v614, %v715
    %717 = vdwg.mxu0
    %v718 = vxor.u32 %v696, 2147483648
    %v719 = vxor.u32 %v702, 2147483648
    %v720 = vxor.u32 %v708, 2147483648
    %v721 = vxor.u32 %v714, 2147483648
    %v722 = vmul.f32 %v718, 1.442695
    %v723 = vpow.pop %v722
    %v724 = vmul.f32 %v719, 1.442695
    %v725 = vpow.pop %v724
    %v726 = vmul.f32 %v720, 1.442695
    %v727 = vpow.pop %v726
    %v728 = vmul.f32 %v721, 1.442695
    %v729 = vpow.pop %v728
    %v730 = vadd.f32 %v723, 1.0
    %v731 = vadd.f32 %v725, 1.0
    %v732 = vadd.f32 %v727, 1.0
    %v733 = vadd.f32 %v729, 1.0
    %v734 = vrcp.pop %v730
    %v735 = vmul.f32 1.0, %v734
    %v736 = vrcp.pop %v731
    %v737 = vmul.f32 1.0, %v736
    %v738 = vrcp.pop %v732
    %v739 = vmul.f32 1.0, %v738
    %v740 = vrcp.pop %v733
    %v741 = vmul.f32 1.0, %v740
    %746 = vrot.lane.b32.xlu0 %v735, 64
    %v747 = vpop.permute.xlu0 %746
    %748 = vrot.lane.b32.xlu0 %v737, 64
    %v749 = vpop.permute.xlu0 %748
    %750 = vrot.lane.b32.xlu0 %v739, 64
    %v751 = vpop.permute.xlu0 %750
    %752 = vrot.lane.b32.xlu0 %v741, 64
    %v753 = vpop.permute.xlu0 %752
    %v758 = vadd.f32 %v696, %v747
    %v759 = vadd.f32 %v702, %v749
    %v760 = vadd.f32 %v708, %v751
    %v761 = vadd.f32 %v714, %v753
    %v762 = vadd.f32 %v758, %v698
    %v763 = vadd.f32 %v759, %v704
    %v764 = vadd.f32 %v760, %v710
    %v765 = vadd.f32 %v761, %v716
    %v766 = vmax.f32 %v762, 0.0
    %v767 = vmax.f32 %v763, 0.0
    %v768 = vmax.f32 %v764, 0.0
    %v769 = vmax.f32 %v765, 0.0
    %vm770 = vcmask 523264
    %771 = vst.msk [vmem:[#allocation11] sm:$0xff] %vm770, %v766
    %772 = vst.msk [vmem:[#allocation11 + $0x8] sm:$0xff] %vm770, %v767
    %773 = vst.msk [vmem:[#allocation11 + $0x10] sm:$0xff] %vm770, %v768
    %774 = vst.msk [vmem:[#allocation11 + $0x18] sm:$0xff] %vm770, %v769
    // Predicated region
    $region50: #{tpu_custom_call.1} parent=1 // pred_check
      _
    $region51: #{tpu_custom_call.1} parent=1 // pred_check_branch
      %776 = sbr.rel (0) target = $region53
    $region52: #{tpu_custom_call.1} parent=1 // pred_region
      %s778 = ssub.s32 512, 512
      %779 = vsyncadd [#allocation4], %s778
      %s780 = sshll.u32 [#allocation11], 4
      %s781 = int_to_ptr.vmem [resolvable:$true] %s780
      %786 = dma.vmem_to_hbm [thread:$0]  %s781, 512, %s7, [#allocation4], 128, 128, 8
    $region53: #{tpu_custom_call.1} parent=1 // pred_fallthru
      _
    // Predicated region
    $region54: #{tpu_custom_call.1} parent=1 // pred_check
      _
    $region55: #{tpu_custom_call.1} parent=1 // pred_check_branch
      %788 = sbr.rel (0) target = $region57
    $region56: #{tpu_custom_call.1} parent=1 // pred_region
      %789 = dma.done [#allocation4], 512
    $region57: #{tpu_custom_call.1} parent=1 // pred_fallthru
      _
    %790 = vsyncpa [#allocation3], 1
    %791 = vsyncpa [#allocation6], 1
    %792 = vsyncpa [#allocation9], 1
    %793 = vsyncpa [#allocation4], 1

</llo_original>
